<compile_context>
chip_gen: v6e
topology: v6e:2x2x1
jax: 0.10.0
libtpu: 0.0.40
codegen_flags: <defaults>
</compile_context>

<pallas_src>
import functools

import jax
import jax.numpy as jnp
from jax.experimental import pallas as pl
from jax.experimental.pallas import tpu as pltpu

LEAKY_SLOPE = 0.01  # nn.LeakyReLU default negative_slope


# ----------------------------------------------------------------------------
# Kernel: one grid step = one (brain, batch-tile) pair; whole 4-layer MLP
# (4 matmuls + bias + LeakyReLU + exp(log_std)) fused in VMEM.
# ----------------------------------------------------------------------------
def _split_policy_kernel(x_ref,
                         w1_ref, b1_ref,
                         w2_ref, b2_ref,
                         w3_ref, b3_ref,
                         w4_ref, b4_ref,
                         logstd_ref,
                         mean_ref, std_ref):
    def leaky_relu(h):
        return jnp.where(h > 0, h, LEAKY_SLOPE * h)

    def layer(h, w_ref, b_ref):
        # bf16 MXU inputs, f32 accumulation; bias add stays f32 on the VPU.
        return (jnp.dot(h.astype(jnp.bfloat16), w_ref[0],
                        preferred_element_type=jnp.float32)
                + b_ref[0])

    h = x_ref[...].astype(jnp.float32)
    h = leaky_relu(layer(h, w1_ref, b1_ref))
    h = leaky_relu(layer(h, w2_ref, b2_ref))
    h = leaky_relu(layer(h, w3_ref, b3_ref))
    mean = layer(h, w4_ref, b4_ref)

    mean_ref[0] = mean
    # std = exp(log_std) broadcast over the batch rows of this tile.
    std_ref[0] = jnp.broadcast_to(jnp.exp(logstd_ref[0]), mean.shape)


def _pick_batch_tile(batch):
    """Batch tile sized for the smallest (v7x, 64 MiB) VMEM budget."""
    if batch <= 512:
        return batch
    for tb in (512, 256, 128, 64, 32, 16, 8):
        if batch % tb == 0:
            return tb
    return batch


def split_policy_forward(x, params, *, tb=None):
    """Fused forward for both brains.  x: (B, obs+latent) f32.
    Returns mean, std with shape (2B, action_dim // 2)."""
    B, in_dim = x.shape
    act_half = params["w4"].shape[-1]

    if tb is None:
        tb = _pick_batch_tile(B)
    nbt = B // tb

    def x_map(b, i):        # same input slab for both brains
        return (i, 0)

    def w_map(b, i):        # weights depend on brain only -> stay resident
        return (b, 0, 0)

    def o_map(b, i):        # brain-major output slab == torch cat(dim=0)
        return (b, i, 0)

    def w_spec(w):
        return pl.BlockSpec((1,) + w.shape[1:], w_map)

    args = (x,
            params["w1"], params["b1"],
            params["w2"], params["b2"],
            params["w3"], params["b3"],
            params["w4"], params["b4"],
            params["log_std"])

    in_specs = ([pl.BlockSpec((tb, in_dim), x_map)]
                + [w_spec(a) for a in args[1:]])
    out_spec = pl.BlockSpec((1, tb, act_half), o_map)

    mean, std = pl.pallas_call(
        _split_policy_kernel,
        grid=(2, nbt),
        out_shape=(jax.ShapeDtypeStruct((2, B, act_half), jnp.float32),
                   jax.ShapeDtypeStruct((2, B, act_half), jnp.float32)),
        in_specs=in_specs,
        out_specs=(out_spec, out_spec),
        compiler_params=pltpu.CompilerParams(
            dimension_semantics=("parallel", "parallel")),
    )(*args)

    # (2, B, act/2) -> (2B, act/2): contiguous reshape, no data movement;
    # exactly torch.cat((left, right), dim=0).
    return mean.reshape(2 * B, act_half), std.reshape(2 * B, act_half)


# ----------------------------------------------------------------------------
# Parameter construction (deterministic, PyTorch-Linear-like init).
# Weights are stored transposed: (in_features, out_features).
# ----------------------------------------------------------------------------
def init_gait_policy_params(key, in_dim, action_dim, hidden_dims):
    dims = (in_dim,) + tuple(hidden_dims) + (action_dim,)
    params = {}
    keys = jax.random.split(key, 2 * (len(dims) - 1))
    for i in range(len(dims) - 1):
        fan_in = dims[i]
        bound = 1.0 / float(fan_in) ** 0.5
        w = jax.random.uniform(keys[2 * i], (dims[i], dims[i + 1]),
                               minval=-bound, maxval=bound, dtype=jnp.float32)
        b = jax.random.uniform(keys[2 * i + 1], (1, dims[i + 1]),
                               minval=-bound, maxval=bound, dtype=jnp.float32)
        params[f"w{i + 1}"] = w
        params[f"b{i + 1}"] = b
    params["log_std"] = jnp.full((1, action_dim), -1.0, dtype=jnp.float32)
    return params


def stack_split_params(left, right, latent_dim, n_layers):
    """Stack left/right params along a leading brain axis.  The right brain's
    w1 is zero-padded over the latent rows (must be exactly zero so the right
    brain stays a function of obs only).  Weights -> bf16, biases/log_std f32."""
    stacked = {}
    h1 = right["w1"].shape[1]
    r_w1 = jnp.concatenate(
        [right["w1"], jnp.zeros((latent_dim, h1), jnp.float32)], axis=0)
    stacked["w1"] = jnp.stack([left["w1"], r_w1]).astype(jnp.bfloat16)
    for i in range(2, n_layers + 1):
        stacked[f"w{i}"] = jnp.stack(
            [left[f"w{i}"], right[f"w{i}"]]).astype(jnp.bfloat16)
    for i in range(1, n_layers + 1):
        stacked[f"b{i}"] = jnp.stack([left[f"b{i}"], right[f"b{i}"]])
    stacked["log_std"] = jnp.stack([left["log_std"], right["log_std"]])
    return stacked


class SplitPolicyPallas:
    """JAX/Pallas port of SplitPolicy.forward (batched, 2-D input case)."""

    def __init__(self, obs_dim, latent_dim, action_dim,
                 hidden_dims=(512, 512, 512), seed=0):
        assert action_dim % 2 == 0
        assert len(hidden_dims) == 3, "kernel is specialized for 3 hidden layers"
        self.obs_dim = obs_dim
        self.latent_dim = latent_dim
        key = jax.random.PRNGKey(seed)
        kl, kr = jax.random.split(key)
        left = init_gait_policy_params(
            kl, obs_dim + latent_dim, action_dim // 2, hidden_dims)
        right = init_gait_policy_params(
            kr, obs_dim, action_dim // 2, hidden_dims)
        self.params = stack_split_params(
            left, right, latent_dim, n_layers=len(hidden_dims) + 1)

    @functools.partial(jax.jit, static_argnums=0)
    def __call__(self, x):
        # x: (B, obs_dim + latent_dim); no wrapper-side slice/concat needed.
        mean, std = split_policy_forward(x, self.params)
        return mean, std, None


if __name__ == "__main__":
    # Small, module-consistent shapes.
    obs_dim, latent_dim, action_dim = 48, 16, 16
    hidden_dims = (128, 128, 128)
    batch = 4

    policy = SplitPolicyPallas(obs_dim, latent_dim, action_dim,
                               hidden_dims=hidden_dims, seed=0)

    x = jax.random.normal(jax.random.PRNGKey(0),
                          (batch, obs_dim + latent_dim), dtype=jnp.float32)

    mean, std, _ = policy(x)
    jax.block_until_ready((mean, std))

    assert mean.shape == (2 * batch, action_dim // 2)
    assert std.shape == (2 * batch, action_dim // 2)
    assert bool(jnp.all(std > 0))
    print("KERNEL_OK")
</pallas_src>

<mosaic_0001>
module attributes {stable_mosaic.version = 11 : i64} {
  func.func @_split_policy_kernel(%arg0: i32, %arg1: i32, %arg2: memref<4x64xf32, #tpu.memory_space<vmem>>, %arg3: memref<1x64x128xbf16, #tpu.memory_space<vmem>>, %arg4: memref<1x1x128xf32, #tpu.memory_space<vmem>>, %arg5: memref<1x128x128xbf16, #tpu.memory_space<vmem>>, %arg6: memref<1x1x128xf32, #tpu.memory_space<vmem>>, %arg7: memref<1x128x128xbf16, #tpu.memory_space<vmem>>, %arg8: memref<1x1x128xf32, #tpu.memory_space<vmem>>, %arg9: memref<1x128x8xbf16, #tpu.memory_space<vmem>>, %arg10: memref<1x1x8xf32, #tpu.memory_space<vmem>>, %arg11: memref<1x1x8xf32, #tpu.memory_space<vmem>>, %arg12: memref<1x4x8xf32, #tpu.memory_space<vmem>>, %arg13: memref<1x4x8xf32, #tpu.memory_space<vmem>>) attributes {dimension_semantics = [#tpu.dimension_semantics<parallel>, #tpu.dimension_semantics<parallel>], iteration_bounds = array<i64: 2, 1>, scalar_prefetch = 0 : i64, scratch_operands = 0 : i64, tpu.core_type = #tpu.core_type<tc>, window_params = [{transform_indices = @transform_0, window_bounds = array<i64: 4, 64>}, {transform_indices = @transform_1, window_bounds = array<i64: 1, 64, 128>}, {transform_indices = @transform_2, window_bounds = array<i64: 1, 1, 128>}, {transform_indices = @transform_3, window_bounds = array<i64: 1, 128, 128>}, {transform_indices = @transform_4, window_bounds = array<i64: 1, 1, 128>}, {transform_indices = @transform_5, window_bounds = array<i64: 1, 128, 128>}, {transform_indices = @transform_6, window_bounds = array<i64: 1, 1, 128>}, {transform_indices = @transform_7, window_bounds = array<i64: 1, 128, 8>}, {transform_indices = @transform_8, window_bounds = array<i64: 1, 1, 8>}, {transform_indices = @transform_9, window_bounds = array<i64: 1, 1, 8>}, {transform_indices = @transform_10, window_bounds = array<i64: 1, 4, 8>}, {transform_indices = @transform_11, window_bounds = array<i64: 1, 4, 8>}]} {
    %c0 = arith.constant 0 : index
    %c0_0 = arith.constant 0 : index
    %0 = vector.load %arg2[%c0, %c0_0] : memref<4x64xf32, #tpu.memory_space<vmem>>, vector<4x64xf32>
    %1 = arith.truncf %0 : vector<4x64xf32> to vector<4x64xbf16>
    %c0_1 = arith.constant 0 : index
    %c0_2 = arith.constant 0 : index
    %c0_3 = arith.constant 0 : index
    %2 = vector.load %arg3[%c0_1, %c0_2, %c0_3] : memref<1x64x128xbf16, #tpu.memory_space<vmem>>, vector<1x64x128xbf16>
    %3 = vector.shape_cast %2 : vector<1x64x128xbf16> to vector<64x128xbf16>
    %cst = arith.constant dense<0.000000e+00> : vector<4x128xf32>
    %4 = tpu.matmul %1, %3, %cst {dimension_numbers = #tpu.dot_dimension_numbers<[1], [0], [0], [1], [0, 0, 1, 1], [], []>} : vector<4x64xbf16>, vector<64x128xbf16>, vector<4x128xf32> -> vector<4x128xf32>
    %c0_4 = arith.constant 0 : index
    %c0_5 = arith.constant 0 : index
    %c0_6 = arith.constant 0 : index
    %5 = vector.load %arg4[%c0_4, %c0_5, %c0_6] : memref<1x1x128xf32, #tpu.memory_space<vmem>>, vector<1x1x128xf32>
    %6 = vector.shape_cast %5 : vector<1x1x128xf32> to vector<1x128xf32>
    %7 = vector.broadcast %6 : vector<1x128xf32> to vector<4x128xf32>
    %8 = arith.addf %4, %7 : vector<4x128xf32>
    %cst_7 = arith.constant 0.000000e+00 : f32
    %9 = vector.broadcast %cst_7 : f32 to vector<4x128xf32>
    %10 = arith.cmpf ogt, %8, %9 : vector<4x128xf32>
    %cst_8 = arith.constant 0.00999999977 : f32
    %11 = vector.broadcast %cst_8 : f32 to vector<4x128xf32>
    %12 = arith.mulf %11, %8 : vector<4x128xf32>
    %13 = arith.select %10, %8, %12 : vector<4x128xi1>, vector<4x128xf32>
    %14 = arith.truncf %13 : vector<4x128xf32> to vector<4x128xbf16>
    %c0_9 = arith.constant 0 : index
    %c0_10 = arith.constant 0 : index
    %c0_11 = arith.constant 0 : index
    %15 = vector.load %arg5[%c0_9, %c0_10, %c0_11] : memref<1x128x128xbf16, #tpu.memory_space<vmem>>, vector<1x128x128xbf16>
    %16 = vector.shape_cast %15 : vector<1x128x128xbf16> to vector<128x128xbf16>
    %cst_12 = arith.constant dense<0.000000e+00> : vector<4x128xf32>
    %17 = tpu.matmul %14, %16, %cst_12 {dimension_numbers = #tpu.dot_dimension_numbers<[1], [0], [0], [1], [0, 0, 1, 1], [], []>} : vector<4x128xbf16>, vector<128x128xbf16>, vector<4x128xf32> -> vector<4x128xf32>
    %c0_13 = arith.constant 0 : index
    %c0_14 = arith.constant 0 : index
    %c0_15 = arith.constant 0 : index
    %18 = vector.load %arg6[%c0_13, %c0_14, %c0_15] : memref<1x1x128xf32, #tpu.memory_space<vmem>>, vector<1x1x128xf32>
    %19 = vector.shape_cast %18 : vector<1x1x128xf32> to vector<1x128xf32>
    %20 = vector.broadcast %19 : vector<1x128xf32> to vector<4x128xf32>
    %21 = arith.addf %17, %20 : vector<4x128xf32>
    %cst_16 = arith.constant 0.000000e+00 : f32
    %22 = vector.broadcast %cst_16 : f32 to vector<4x128xf32>
    %23 = arith.cmpf ogt, %21, %22 : vector<4x128xf32>
    %cst_17 = arith.constant 0.00999999977 : f32
    %24 = vector.broadcast %cst_17 : f32 to vector<4x128xf32>
    %25 = arith.mulf %24, %21 : vector<4x128xf32>
    %26 = arith.select %23, %21, %25 : vector<4x128xi1>, vector<4x128xf32>
    %27 = arith.truncf %26 : vector<4x128xf32> to vector<4x128xbf16>
    %c0_18 = arith.constant 0 : index
    %c0_19 = arith.constant 0 : index
    %c0_20 = arith.constant 0 : index
    %28 = vector.load %arg7[%c0_18, %c0_19, %c0_20] : memref<1x128x128xbf16, #tpu.memory_space<vmem>>, vector<1x128x128xbf16>
    %29 = vector.shape_cast %28 : vector<1x128x128xbf16> to vector<128x128xbf16>
    %cst_21 = arith.constant dense<0.000000e+00> : vector<4x128xf32>
    %30 = tpu.matmul %27, %29, %cst_21 {dimension_numbers = #tpu.dot_dimension_numbers<[1], [0], [0], [1], [0, 0, 1, 1], [], []>} : vector<4x128xbf16>, vector<128x128xbf16>, vector<4x128xf32> -> vector<4x128xf32>
    %c0_22 = arith.constant 0 : index
    %c0_23 = arith.constant 0 : index
    %c0_24 = arith.constant 0 : index
    %31 = vector.load %arg8[%c0_22, %c0_23, %c0_24] : memref<1x1x128xf32, #tpu.memory_space<vmem>>, vector<1x1x128xf32>
    %32 = vector.shape_cast %31 : vector<1x1x128xf32> to vector<1x128xf32>
    %33 = vector.broadcast %32 : vector<1x128xf32> to vector<4x128xf32>
    %34 = arith.addf %30, %33 : vector<4x128xf32>
    %cst_25 = arith.constant 0.000000e+00 : f32
    %35 = vector.broadcast %cst_25 : f32 to vector<4x128xf32>
    %36 = arith.cmpf ogt, %34, %35 : vector<4x128xf32>
    %cst_26 = arith.constant 0.00999999977 : f32
    %37 = vector.broadcast %cst_26 : f32 to vector<4x128xf32>
    %38 = arith.mulf %37, %34 : vector<4x128xf32>
    %39 = arith.select %36, %34, %38 : vector<4x128xi1>, vector<4x128xf32>
    %40 = arith.truncf %39 : vector<4x128xf32> to vector<4x128xbf16>
    %c0_27 = arith.constant 0 : index
    %c0_28 = arith.constant 0 : index
    %c0_29 = arith.constant 0 : index
    %41 = vector.load %arg9[%c0_27, %c0_28, %c0_29] : memref<1x128x8xbf16, #tpu.memory_space<vmem>>, vector<1x128x8xbf16>
    %42 = vector.shape_cast %41 : vector<1x128x8xbf16> to vector<128x8xbf16>
    %cst_30 = arith.constant dense<0.000000e+00> : vector<4x8xf32>
    %43 = tpu.matmul %40, %42, %cst_30 {dimension_numbers = #tpu.dot_dimension_numbers<[1], [0], [0], [1], [0, 0, 1, 1], [], []>} : vector<4x128xbf16>, vector<128x8xbf16>, vector<4x8xf32> -> vector<4x8xf32>
    %c0_31 = arith.constant 0 : index
    %c0_32 = arith.constant 0 : index
    %c0_33 = arith.constant 0 : index
    %44 = vector.load %arg10[%c0_31, %c0_32, %c0_33] : memref<1x1x8xf32, #tpu.memory_space<vmem>>, vector<1x1x8xf32>
    %45 = vector.shape_cast %44 : vector<1x1x8xf32> to vector<1x8xf32>
    %46 = vector.broadcast %45 : vector<1x8xf32> to vector<4x8xf32>
    %47 = arith.addf %43, %46 : vector<4x8xf32>
    %c0_34 = arith.constant 0 : index
    %c0_35 = arith.constant 0 : index
    %c0_36 = arith.constant 0 : index
    %48 = vector.load %arg12[%c0_34, %c0_35, %c0_36] : memref<1x4x8xf32, #tpu.memory_space<vmem>>, vector<1x4x8xf32>
    %49 = vector.shape_cast %48 : vector<1x4x8xf32> to vector<4x8xf32>
    %50 = vector.shape_cast %47 : vector<4x8xf32> to vector<1x4x8xf32>
    tpu.vector_store %arg12[%c0_34, %c0_35, %c0_36], %50 {strides = array<i32>} : memref<1x4x8xf32, #tpu.memory_space<vmem>>, vector<1x4x8xf32>,
    %c0_37 = arith.constant 0 : index
    %c0_38 = arith.constant 0 : index
    %c0_39 = arith.constant 0 : index
    %51 = vector.load %arg11[%c0_37, %c0_38, %c0_39] : memref<1x1x8xf32, #tpu.memory_space<vmem>>, vector<1x1x8xf32>
    %52 = vector.shape_cast %51 : vector<1x1x8xf32> to vector<1x8xf32>
    %53 = math.exp %52 : vector<1x8xf32>
    %54 = vector.shape_cast %53 : vector<1x8xf32> to vector<1x8xf32>
    %55 = vector.broadcast %54 : vector<1x8xf32> to vector<4x8xf32>
    %c0_40 = arith.constant 0 : index
    %c0_41 = arith.constant 0 : index
    %c0_42 = arith.constant 0 : index
    %56 = vector.load %arg13[%c0_40, %c0_41, %c0_42] : memref<1x4x8xf32, #tpu.memory_space<vmem>>, vector<1x4x8xf32>
    %57 = vector.shape_cast %56 : vector<1x4x8xf32> to vector<4x8xf32>
    %58 = vector.shape_cast %55 : vector<4x8xf32> to vector<1x4x8xf32>
    tpu.vector_store %arg13[%c0_40, %c0_41, %c0_42], %58 {strides = array<i32>} : memref<1x4x8xf32, #tpu.memory_space<vmem>>, vector<1x4x8xf32>,
    return
  }
  func.func @transform_0(%arg0: i32, %arg1: i32) -> (i32, i32) {
    %c0_i32 = arith.constant 0 : i32
    %c0_i32_0 = arith.constant 0 : i32
    return %arg1, %c0_i32 : i32, i32
  }
  func.func @transform_1(%arg0: i32, %arg1: i32) -> (i32, i32, i32) {
    %c0_i32 = arith.constant 0 : i32
    %c0_i32_0 = arith.constant 0 : i32
    %c0_i32_1 = arith.constant 0 : i32
    return %arg0, %c0_i32, %c0_i32_0 : i32, i32, i32
  }
  func.func @transform_2(%arg0: i32, %arg1: i32) -> (i32, i32, i32) {
    %c0_i32 = arith.constant 0 : i32
    %c0_i32_0 = arith.constant 0 : i32
    %c0_i32_1 = arith.constant 0 : i32
    return %arg0, %c0_i32, %c0_i32_0 : i32, i32, i32
  }
  func.func @transform_3(%arg0: i32, %arg1: i32) -> (i32, i32, i32) {
    %c0_i32 = arith.constant 0 : i32
    %c0_i32_0 = arith.constant 0 : i32
    %c0_i32_1 = arith.constant 0 : i32
    return %arg0, %c0_i32, %c0_i32_0 : i32, i32, i32
  }
  func.func @transform_4(%arg0: i32, %arg1: i32) -> (i32, i32, i32) {
    %c0_i32 = arith.constant 0 : i32
    %c0_i32_0 = arith.constant 0 : i32
    %c0_i32_1 = arith.constant 0 : i32
    return %arg0, %c0_i32, %c0_i32_0 : i32, i32, i32
  }
  func.func @transform_5(%arg0: i32, %arg1: i32) -> (i32, i32, i32) {
    %c0_i32 = arith.constant 0 : i32
    %c0_i32_0 = arith.constant 0 : i32
    %c0_i32_1 = arith.constant 0 : i32
    return %arg0, %c0_i32, %c0_i32_0 : i32, i32, i32
  }
  func.func @transform_6(%arg0: i32, %arg1: i32) -> (i32, i32, i32) {
    %c0_i32 = arith.constant 0 : i32
    %c0_i32_0 = arith.constant 0 : i32
    %c0_i32_1 = arith.constant 0 : i32
    return %arg0, %c0_i32, %c0_i32_0 : i32, i32, i32
  }
  func.func @transform_7(%arg0: i32, %arg1: i32) -> (i32, i32, i32) {
    %c0_i32 = arith.constant 0 : i32
    %c0_i32_0 = arith.constant 0 : i32
    %c0_i32_1 = arith.constant 0 : i32
    return %arg0, %c0_i32, %c0_i32_0 : i32, i32, i32
  }
  func.func @transform_8(%arg0: i32, %arg1: i32) -> (i32, i32, i32) {
    %c0_i32 = arith.constant 0 : i32
    %c0_i32_0 = arith.constant 0 : i32
    %c0_i32_1 = arith.constant 0 : i32
    return %arg0, %c0_i32, %c0_i32_0 : i32, i32, i32
  }
  func.func @transform_9(%arg0: i32, %arg1: i32) -> (i32, i32, i32) {
    %c0_i32 = arith.constant 0 : i32
    %c0_i32_0 = arith.constant 0 : i32
    %c0_i32_1 = arith.constant 0 : i32
    return %arg0, %c0_i32, %c0_i32_0 : i32, i32, i32
  }
  func.func @transform_10(%arg0: i32, %arg1: i32) -> (i32, i32, i32) {
    %c0_i32 = arith.constant 0 : i32
    %c0_i32_0 = arith.constant 0 : i32
    return %arg0, %arg1, %c0_i32 : i32, i32, i32
  }
  func.func @transform_11(%arg0: i32, %arg1: i32) -> (i32, i32, i32) {
    %c0_i32 = arith.constant 0 : i32
    %c0_i32_0 = arith.constant 0 : i32
    return %arg0, %arg1, %c0_i32 : i32, i32, i32
  }
}

</mosaic_0001>

<llo_original>
// kernel: a_call__.1
$region0: #{a_call__.1}
  #allocation0 [shape = 'u32[]', space=smem, size = 0x4, offset = 0x4, fixed_abs, tag = 'smem constant byte address 0x4 - core index']
  #allocation1 [shape = 'u32[144,128]{1,0:T(1,128)}', space=vmem, size = 0x12000, scoped, tag = 'internal scratch']
  %s0 = inlined_call_operand.hbm [shape: f32[4,64], index: 0, kind: input, shape index: {}]
  %s1 = inlined_call_operand.hbm [shape: bf16[2,64,128], index: 1, kind: input, shape index: {}]
  %s2 = inlined_call_operand.vmem [shape: f32[2,1,128], index: 2, kind: input, shape index: {}]
  %s3 = inlined_call_operand.hbm [shape: bf16[2,128,128], index: 3, kind: input, shape index: {}]
  %s4 = inlined_call_operand.vmem [shape: f32[2,1,128], index: 4, kind: input, shape index: {}]
  %s5 = inlined_call_operand.hbm [shape: bf16[2,128,128], index: 5, kind: input, shape index: {}]
  %s6 = inlined_call_operand.vmem [shape: f32[2,1,128], index: 6, kind: input, shape index: {}]
  %s7 = inlined_call_operand.hbm [shape: bf16[2,128,8], index: 7, kind: input, shape index: {}]
  %s8 = inlined_call_operand.vmem [shape: f32[2,1,8], index: 8, kind: input, shape index: {}]
  %s9 = inlined_call_operand.vmem [shape: f32[2,1,8], index: 9, kind: input, shape index: {}]
  %s10 = inlined_call_operand.hbm [shape: f32[2,4,8], index: 10, kind: output, shape index: {0}]
  %s11 = inlined_call_operand.hbm [shape: f32[2,4,8], index: 11, kind: output, shape index: {1}]
  %12 = xla_tuple %s10, %s11
  %s13 = sld [smem:[#allocation0]]
  $region101: #{a_call__.1} parent=0
    _
  %s15 = ssub.s32 1, %s13
  %s16 = scalar_select 0, %s15, %s13
  $region1: #{a_call__.1} parent=0
    #allocation2 [shape = 'u8[2048]{0}', space=vmem, size = 0x800, scoped, tag = 'input window, operand 0, single buffered']
    #allocation3 [shape = 's32[2]{0}', space=sflag, size = 0x8, scoped, tag = 'scoped memory for a_call__.1']
    #allocation4 [shape = 's32[2]{0}', space=sflag, size = 0x8, scoped, tag = 'scoped memory for a_call__.1']
    #allocation5 [shape = 'u8[32768]{0}', space=vmem, size = 0x8000, scoped, tag = 'input window, operand 1']
    #allocation6 [shape = 's32[2]{0}', space=sflag, size = 0x8, scoped, tag = 'scoped memory for a_call__.1']
    #allocation7 [shape = 'u8[65536]{0}', space=vmem, size = 0x10000, scoped, tag = 'input window, operand 3']
    #allocation8 [shape = 'u8[65536]{0}', space=vmem, size = 0x10000, scoped, tag = 'input window, operand 5']
    #allocation9 [shape = 's32[2]{0}', space=sflag, size = 0x8, scoped, tag = 'scoped memory for a_call__.1']
    #allocation10 [shape = 'u8[65536]{0}', space=vmem, size = 0x10000, scoped, tag = 'input window, operand 7']
    #allocation11 [shape = 'u8[4096]{0}', space=vmem, size = 0x1000, scoped, tag = 'output window, operand 0']
    #allocation12 [shape = 'u8[4096]{0}', space=vmem, size = 0x1000, scoped, tag = 'output window, operand 1']
    #allocation13 [shape = 's32[2]{0}', space=sflag, size = 0x8, scoped, tag = 'scoped memory for a_call__.1']
    %17 = vsyncpa [#allocation3], 0
    %18 = vsyncpa [#allocation6], 0
    %s19 = scalar_lea.sflag [#allocation6], 1
    %20 = vsyncpa %s19, 0
    %21 = vsyncpa [#allocation9], 0
    %s22 = scalar_lea.sflag [#allocation9], 1
    %23 = vsyncpa %s22, 0
    %24 = vsyncpa [#allocation4], 0
    %s25 = scalar_lea.sflag [#allocation4], 1
    %26 = vsyncpa %s25, 0
    %27 = vsyncpa [#allocation13], 0
    %s28 = scalar_lea.sflag [#allocation13], 1
    %29 = vsyncpa %s28, 0
    loop: start=0, step=1, limit=4
    $region2: #{a_call__.1} parent=1 // loop_pre_header
      _
    $region3: #{a_call__.1} parent=1 // loop_header
      %s31 = sphi 0, %s35
      %p32 = scmp.ge.s32.totalorder %s31, 4
      %s38 = sphi 0, %s50
      %s39 = sphi 0, %s46
      %s40 = sphi 0, %s38
      %s41 = sphi 0, %s39
      %s42 = sphi 0, %s40
      %s43 = sphi 0, %s41
      %s53 = sphi 0, %s55
      %s56 = sphi 0, %s53
      %s57 = sphi 0, %s56
      %s73 = sphi 0, %s57
      %s79 = sphi 0, %s81
      %s82 = sphi 0, %s79
      %s83 = sphi 0, %s82
      %s99 = sphi 0, %s83
      %s105 = sphi 0, %s107
      %s108 = sphi 0, %s105
      %s109 = sphi 0, %s108
      %s125 = sphi 0, %s109
      %s131 = sphi 0, %s133
      %s134 = sphi 0, %s131
      %s135 = sphi 0, %s134
      %s151 = sphi 0, %s135
      %s157 = sphi 0, %s159
      %s160 = sphi 0, %s157
      %s161 = sphi 0, %s160
      %s177 = sphi 0, %s161
      %s183 = sphi 0, %s185
      %s186 = sphi 0, %s183
      %s187 = sphi 0, %s186
      %s203 = sphi 0, %s187
      %s209 = sphi 0, %s211
      %s212 = sphi 0, %s209
      %s213 = sphi 0, %s212
      %s229 = sphi 0, %s213
      %s235 = sphi 0, %s237
      %s238 = sphi 0, %s235
      %s239 = sphi 0, %s238
      %s255 = sphi 0, %s239
      %s261 = sphi 0, %s263
      %s264 = sphi 0, %s261
      %s265 = sphi 0, %s264
      %s281 = sphi 0, %s265
      %s287 = sphi 0, %s289
      %s290 = sphi 0, %s287
      %s291 = sphi 0, %s290
      %s307 = sphi 0, %s291
      %s315 = sphi 0, %s317
      %s318 = sphi 0, %s315
      %s319 = sphi 0, %s318
      %s335 = sphi 0, %s319
      %s343 = sphi 0, %s345
      %s346 = sphi 0, %s343
      %s347 = sphi 0, %s346
      %s363 = sphi 0, %s347
    $region4: #{a_call__.1} parent=1 // loop_header_branch
      %34 = sbr.rel (%p32) target = $region8
    $region5: #{a_call__.1} parent=1 // loop_body
      %s36 = ssub.s32 %s31, 1
      %s37 = ssub.s32 %s31, 2
      %s44 = sadd.s32 1, %s39
      %p45 = scmp.ge.s32.totalorder %s44, 1
      %s46 = scalar_select %p45, 0, %s44
      %s47 = sadd.s32 1, %s38
      %s48 = scalar_select %p45, %s47, %s38
      %p49 = scmp.ge.s32.totalorder %s48, 2
      %s50 = scalar_select %p49, 0, %s48
      %s51 = ssub.s32 %s39, %s46
      %p52 = scmp.eq.s32.totalorder %s51, 0
      %s54 = sadd.s32 %s53, 1
      %s55 = scalar_select %p52, %s53, %s54
      %p58 = pneg %p52
      %p59 = scmp.eq.s32.totalorder %s31, 1
      %p60 = por %p58, %p59
      %p61 = scmp.ne.s32.totalorder %s53, %s56
      %p62 = scmp.eq.s32.totalorder %s31, 0
      %p63 = por %p61, %p62
      %p64 = scmp.ne.s32.totalorder %s53, %s56
      %p65 = scmp.eq.s32.totalorder %s36, 1
      %p66 = por %p64, %p65
      %p67 = scmp.ne.s32.totalorder %s56, %s57
      %p68 = scmp.eq.s32.totalorder %s36, 0
      %p69 = por %p67, %p68
      %p70 = scmp.ne.s32.totalorder %s56, %s57
      %p71 = scmp.eq.s32.totalorder %s37, 1
      %p72 = por %p70, %p71
      %p74 = scmp.ne.s32.totalorder %s57, %s73
      %p75 = scmp.eq.s32.totalorder %s37, 0
      %p76 = por %p74, %p75
      %s77 = ssub.s32 %s38, %s50
      %p78 = scmp.eq.s32.totalorder %s77, 0
      %s80 = sadd.s32 %s79, 1
      %s81 = scalar_select %p78, %s79, %s80
      %p84 = pneg %p78
      %p85 = scmp.eq.s32.totalorder %s31, 1
      %p86 = por %p84, %p85
      %p87 = scmp.ne.s32.totalorder %s79, %s82
      %p88 = scmp.eq.s32.totalorder %s31, 0
      %p89 = por %p87, %p88
      %p90 = scmp.ne.s32.totalorder %s79, %s82
      %p91 = scmp.eq.s32.totalorder %s36, 1
      %p92 = por %p90, %p91
      %p93 = scmp.ne.s32.totalorder %s82, %s83
      %p94 = scmp.eq.s32.totalorder %s36, 0
      %p95 = por %p93, %p94
      %p96 = scmp.ne.s32.totalorder %s82, %s83
      %p97 = scmp.eq.s32.totalorder %s37, 1
      %p98 = por %p96, %p97
      %p100 = scmp.ne.s32.totalorder %s83, %s99
      %p101 = scmp.eq.s32.totalorder %s37, 0
      %p102 = por %p100, %p101
      %s103 = ssub.s32 %s38, %s50
      %p104 = scmp.eq.s32.totalorder %s103, 0
      %s106 = sadd.s32 %s105, 1
      %s107 = scalar_select %p104, %s105, %s106
      %p110 = pneg %p104
      %p111 = scmp.eq.s32.totalorder %s31, 1
      %p112 = por %p110, %p111
      %p113 = scmp.ne.s32.totalorder %s105, %s108
      %p114 = scmp.eq.s32.totalorder %s31, 0
      %p115 = por %p113, %p114
      %p116 = scmp.ne.s32.totalorder %s105, %s108
      %p117 = scmp.eq.s32.totalorder %s36, 1
      %p118 = por %p116, %p117
      %p119 = scmp.ne.s32.totalorder %s108, %s109
      %p120 = scmp.eq.s32.totalorder %s36, 0
      %p121 = por %p119, %p120
      %p122 = scmp.ne.s32.totalorder %s108, %s109
      %p123 = scmp.eq.s32.totalorder %s37, 1
      %p124 = por %p122, %p123
      %p126 = scmp.ne.s32.totalorder %s109, %s125
      %p127 = scmp.eq.s32.totalorder %s37, 0
      %p128 = por %p126, %p127
      %s129 = ssub.s32 %s38, %s50
      %p130 = scmp.eq.s32.totalorder %s129, 0
      %s132 = sadd.s32 %s131, 1
      %s133 = scalar_select %p130, %s131, %s132
      %p136 = pneg %p130
      %p137 = scmp.eq.s32.totalorder %s31, 1
      %p138 = por %p136, %p137
      %p139 = scmp.ne.s32.totalorder %s131, %s134
      %p140 = scmp.eq.s32.totalorder %s31, 0
      %p141 = por %p139, %p140
      %p142 = scmp.ne.s32.totalorder %s131, %s134
      %p143 = scmp.eq.s32.totalorder %s36, 1
      %p144 = por %p142, %p143
      %p145 = scmp.ne.s32.totalorder %s134, %s135
      %p146 = scmp.eq.s32.totalorder %s36, 0
      %p147 = por %p145, %p146
      %p148 = scmp.ne.s32.totalorder %s134, %s135
      %p149 = scmp.eq.s32.totalorder %s37, 1
      %p150 = por %p148, %p149
      %p152 = scmp.ne.s32.totalorder %s135, %s151
      %p153 = scmp.eq.s32.totalorder %s37, 0
      %p154 = por %p152, %p153
      %s155 = ssub.s32 %s38, %s50
      %p156 = scmp.eq.s32.totalorder %s155, 0
      %s158 = sadd.s32 %s157, 1
      %s159 = scalar_select %p156, %s157, %s158
      %p162 = pneg %p156
      %p163 = scmp.eq.s32.totalorder %s31, 1
      %p164 = por %p162, %p163
      %p165 = scmp.ne.s32.totalorder %s157, %s160
      %p166 = scmp.eq.s32.totalorder %s31, 0
      %p167 = por %p165, %p166
      %p168 = scmp.ne.s32.totalorder %s157, %s160
      %p169 = scmp.eq.s32.totalorder %s36, 1
      %p170 = por %p168, %p169
      %p171 = scmp.ne.s32.totalorder %s160, %s161
      %p172 = scmp.eq.s32.totalorder %s36, 0
      %p173 = por %p171, %p172
      %p174 = scmp.ne.s32.totalorder %s160, %s161
      %p175 = scmp.eq.s32.totalorder %s37, 1
      %p176 = por %p174, %p175
      %p178 = scmp.ne.s32.totalorder %s161, %s177
      %p179 = scmp.eq.s32.totalorder %s37, 0
      %p180 = por %p178, %p179
      %s181 = ssub.s32 %s38, %s50
      %p182 = scmp.eq.s32.totalorder %s181, 0
      %s184 = sadd.s32 %s183, 1
      %s185 = scalar_select %p182, %s183, %s184
      %p188 = pneg %p182
      %p189 = scmp.eq.s32.totalorder %s31, 1
      %p190 = por %p188, %p189
      %p191 = scmp.ne.s32.totalorder %s183, %s186
      %p192 = scmp.eq.s32.totalorder %s31, 0
      %p193 = por %p191, %p192
      %p194 = scmp.ne.s32.totalorder %s183, %s186
      %p195 = scmp.eq.s32.totalorder %s36, 1
      %p196 = por %p194, %p195
      %p197 = scmp.ne.s32.totalorder %s186, %s187
      %p198 = scmp.eq.s32.totalorder %s36, 0
      %p199 = por %p197, %p198
      %p200 = scmp.ne.s32.totalorder %s186, %s187
      %p201 = scmp.eq.s32.totalorder %s37, 1
      %p202 = por %p200, %p201
      %p204 = scmp.ne.s32.totalorder %s187, %s203
      %p205 = scmp.eq.s32.totalorder %s37, 0
      %p206 = por %p204, %p205
      %s207 = ssub.s32 %s38, %s50
      %p208 = scmp.eq.s32.totalorder %s207, 0
      %s210 = sadd.s32 %s209, 1
      %s211 = scalar_select %p208, %s209, %s210
      %p214 = pneg %p208
      %p215 = scmp.eq.s32.totalorder %s31, 1
      %p216 = por %p214, %p215
      %p217 = scmp.ne.s32.totalorder %s209, %s212
      %p218 = scmp.eq.s32.totalorder %s31, 0
      %p219 = por %p217, %p218
      %p220 = scmp.ne.s32.totalorder %s209, %s212
      %p221 = scmp.eq.s32.totalorder %s36, 1
      %p222 = por %p220, %p221
      %p223 = scmp.ne.s32.totalorder %s212, %s213
      %p224 = scmp.eq.s32.totalorder %s36, 0
      %p225 = por %p223, %p224
      %p226 = scmp.ne.s32.totalorder %s212, %s213
      %p227 = scmp.eq.s32.totalorder %s37, 1
      %p228 = por %p226, %p227
      %p230 = scmp.ne.s32.totalorder %s213, %s229
      %p231 = scmp.eq.s32.totalorder %s37, 0
      %p232 = por %p230, %p231
      %s233 = ssub.s32 %s38, %s50
      %p234 = scmp.eq.s32.totalorder %s233, 0
      %s236 = sadd.s32 %s235, 1
      %s237 = scalar_select %p234, %s235, %s236
      %p240 = pneg %p234
      %p241 = scmp.eq.s32.totalorder %s31, 1
      %p242 = por %p240, %p241
      %p243 = scmp.ne.s32.totalorder %s235, %s238
      %p244 = scmp.eq.s32.totalorder %s31, 0
      %p245 = por %p243, %p244
      %p246 = scmp.ne.s32.totalorder %s235, %s238
      %p247 = scmp.eq.s32.totalorder %s36, 1
      %p248 = por %p246, %p247
      %p249 = scmp.ne.s32.totalorder %s238, %s239
      %p250 = scmp.eq.s32.totalorder %s36, 0
      %p251 = por %p249, %p250
      %p252 = scmp.ne.s32.totalorder %s238, %s239
      %p253 = scmp.eq.s32.totalorder %s37, 1
      %p254 = por %p252, %p253
      %p256 = scmp.ne.s32.totalorder %s239, %s255
      %p257 = scmp.eq.s32.totalorder %s37, 0
      %p258 = por %p256, %p257
      %s259 = ssub.s32 %s38, %s50
      %p260 = scmp.eq.s32.totalorder %s259, 0
      %s262 = sadd.s32 %s261, 1
      %s263 = scalar_select %p260, %s261, %s262
      %p266 = pneg %p260
      %p267 = scmp.eq.s32.totalorder %s31, 1
      %p268 = por %p266, %p267
      %p269 = scmp.ne.s32.totalorder %s261, %s264
      %p270 = scmp.eq.s32.totalorder %s31, 0
      %p271 = por %p269, %p270
      %p272 = scmp.ne.s32.totalorder %s261, %s264
      %p273 = scmp.eq.s32.totalorder %s36, 1
      %p274 = por %p272, %p273
      %p275 = scmp.ne.s32.totalorder %s264, %s265
      %p276 = scmp.eq.s32.totalorder %s36, 0
      %p277 = por %p275, %p276
      %p278 = scmp.ne.s32.totalorder %s264, %s265
      %p279 = scmp.eq.s32.totalorder %s37, 1
      %p280 = por %p278, %p279
      %p282 = scmp.ne.s32.totalorder %s265, %s281
      %p283 = scmp.eq.s32.totalorder %s37, 0
      %p284 = por %p282, %p283
      %s285 = ssub.s32 %s38, %s50
      %p286 = scmp.eq.s32.totalorder %s285, 0
      %s288 = sadd.s32 %s287, 1
      %s289 = scalar_select %p286, %s287, %s288
      %p292 = pneg %p286
      %p293 = scmp.eq.s32.totalorder %s31, 1
      %p294 = por %p292, %p293
      %p295 = scmp.ne.s32.totalorder %s287, %s290
      %p296 = scmp.eq.s32.totalorder %s31, 0
      %p297 = por %p295, %p296
      %p298 = scmp.ne.s32.totalorder %s287, %s290
      %p299 = scmp.eq.s32.totalorder %s36, 1
      %p300 = por %p298, %p299
      %p301 = scmp.ne.s32.totalorder %s290, %s291
      %p302 = scmp.eq.s32.totalorder %s36, 0
      %p303 = por %p301, %p302
      %p304 = scmp.ne.s32.totalorder %s290, %s291
      %p305 = scmp.eq.s32.totalorder %s37, 1
      %p306 = por %p304, %p305
      %p308 = scmp.ne.s32.totalorder %s291, %s307
      %p309 = scmp.eq.s32.totalorder %s37, 0
      %p310 = por %p308, %p309
      %s311 = ssub.s32 %s38, %s50
      %s312 = ssub.s32 %s39, %s46
      %s313 = sor.u32 %s311, %s312
      %p314 = scmp.eq.s32.totalorder %s313, 0
      %s316 = sadd.s32 %s315, 1
      %s317 = scalar_select %p314, %s315, %s316
      %p320 = pneg %p314
      %p321 = scmp.eq.s32.totalorder %s31, 1
      %p322 = por %p320, %p321
      %p323 = scmp.ne.s32.totalorder %s315, %s318
      %p324 = scmp.eq.s32.totalorder %s31, 0
      %p325 = por %p323, %p324
      %p326 = scmp.ne.s32.totalorder %s315, %s318
      %p327 = scmp.eq.s32.totalorder %s36, 1
      %p328 = por %p326, %p327
      %p329 = scmp.ne.s32.totalorder %s318, %s319
      %p330 = scmp.eq.s32.totalorder %s36, 0
      %p331 = por %p329, %p330
      %p332 = scmp.ne.s32.totalorder %s318, %s319
      %p333 = scmp.eq.s32.totalorder %s37, 1
      %p334 = por %p332, %p333
      %p336 = scmp.ne.s32.totalorder %s319, %s335
      %p337 = scmp.eq.s32.totalorder %s37, 0
      %p338 = por %p336, %p337
      %s339 = ssub.s32 %s38, %s50
      %s340 = ssub.s32 %s39, %s46
      %s341 = sor.u32 %s339, %s340
      %p342 = scmp.eq.s32.totalorder %s341, 0
      %s344 = sadd.s32 %s343, 1
      %s345 = scalar_select %p342, %s343, %s344
      %p348 = pneg %p342
      %p349 = scmp.eq.s32.totalorder %s31, 1
      %p350 = por %p348, %p349
      %p351 = scmp.ne.s32.totalorder %s343, %s346
      %p352 = scmp.eq.s32.totalorder %s31, 0
      %p353 = por %p351, %p352
      %p354 = scmp.ne.s32.totalorder %s343, %s346
      %p355 = scmp.eq.s32.totalorder %s36, 1
      %p356 = por %p354, %p355
      %p357 = scmp.ne.s32.totalorder %s346, %s347
      %p358 = scmp.eq.s32.totalorder %s36, 0
      %p359 = por %p357, %p358
      %p360 = scmp.ne.s32.totalorder %s346, %s347
      %p361 = scmp.eq.s32.totalorder %s37, 1
      %p362 = por %p360, %p361
      %p364 = scmp.ne.s32.totalorder %s347, %s363
      %p365 = scmp.eq.s32.totalorder %s37, 0
      %p366 = por %p364, %p365
      %p367 = scmp.le.s32.totalorder 1, %s31
      %p368 = scmp.lt.s32.totalorder %s31, 3
      %p369 = pnand %p367, %p368
      %p370 = pneg %p369
      // Predicated region
      $region9: #{a_call__.1} parent=5 // pred_check
        _
      $region10: #{a_call__.1} parent=5 // pred_check_branch
        %372 = sbr.rel (%p369) target = $region12
      $region11: #{a_call__.1} parent=5 // pred_region
        %s373 = ssub.s32 %s31, 1
        // Predicated region
        $region13: #{a_call__.1} parent=11 // pred_check
          %p374 = pneg %p69
        $region14: #{a_call__.1} parent=11 // pred_check_branch
          %376 = sbr.rel (%p374) target = $region16
        $region15: #{a_call__.1} parent=11 // pred_region
          %s378 = ssub.s32 64, 64
          %379 = vsyncadd [#allocation3], %s378
          %s380 = smul.addr %s41, 64
          %s381 = scalar_lea.hbm %s0, %s380
          %s383 = sshll.u32 [#allocation2], 4
          %s384 = int_to_ptr.vmem [resolvable:$true] %s383
          %386 = dma.hbm_to_vmem [thread:$0]  %s381, 64, %s384, [#allocation3]
        $region16: #{a_call__.1} parent=11 // pred_fallthru
          _
      $region12: #{a_call__.1} parent=5 // pred_fallthru
        _
      %p387 = scmp.lt.s32.totalorder %s31, 2
      // Predicated region
      $region17: #{a_call__.1} parent=5 // pred_check
        %p388 = pneg %p387
      $region18: #{a_call__.1} parent=5 // pred_check_branch
        %390 = sbr.rel (%p388) target = $region20
      $region19: #{a_call__.1} parent=5 // pred_region
        // Predicated region
        $region21: #{a_call__.1} parent=19 // pred_check
          %p391 = pneg %p89
        $region22: #{a_call__.1} parent=19 // pred_check_branch
          %393 = sbr.rel (%p391) target = $region24
        $region23: #{a_call__.1} parent=19 // pred_region
          %s394 = sand.u32 %s31, 1
          %s395 = scalar_lea.sflag [#allocation6], %s394
          %s396 = sand.u32 %s79, 1
          %s397 = smul.addr %s396, 32
          %s398 = scalar_lea.vmem [#allocation5], %s397
          %s400 = ssub.s32 512, 512
          %401 = vsyncadd %s395, %s400
          %s402 = smul.addr %s38, 8
          %s403 = smul.addr %s402, 64
          %s404 = scalar_lea.hbm %s1, %s403
          %s405 = sshll.u32 %s398, 4
          %s406 = int_to_ptr.vmem [resolvable:$true] %s405
          %411 = dma.hbm_to_vmem [thread:$0]  %s404, 512, %s406, %s395, 64, 64, 4
        $region24: #{a_call__.1} parent=19 // pred_fallthru
          _
        // Predicated region
        $region25: #{a_call__.1} parent=19 // pred_check
          %p412 = pneg %p115
        $region26: #{a_call__.1} parent=19 // pred_check_branch
          %414 = sbr.rel (%p412) target = $region28
        $region27: #{a_call__.1} parent=19 // pred_region
          %p415 = scmp.lt.s32.totalorder %s38, 1
          %s416 = scalar_select %p415, %s38, 1
          %s417 = scalar_lea.vmem %s2, %s416
        $region28: #{a_call__.1} parent=19 // pred_fallthru
          _
        // Predicated region
        $region29: #{a_call__.1} parent=19 // pred_check
          %p418 = pneg %p141
        $region30: #{a_call__.1} parent=19 // pred_check_branch
          %420 = sbr.rel (%p418) target = $region32
        $region31: #{a_call__.1} parent=19 // pred_region
          %s421 = sand.u32 %s31, 1
          %s422 = scalar_lea.sflag [#allocation6], %s421
          %s423 = sand.u32 %s131, 1
          %s424 = smul.addr %s423, 64
          %s425 = scalar_lea.vmem [#allocation7], %s424
          %s427 = ssub.s32 1024, 1024
          %428 = vsyncadd %s422, %s427
          %s429 = smul.addr %s38, 16
          %s430 = smul.addr %s429, 64
          %s431 = scalar_lea.hbm %s3, %s430
          %s432 = sshll.u32 %s425, 4
          %s433 = int_to_ptr.vmem [resolvable:$true] %s432
          %438 = dma.hbm_to_vmem [thread:$0]  %s431, 1024, %s433, %s422, 64, 64, 4
        $region32: #{a_call__.1} parent=19 // pred_fallthru
          _
        // Predicated region
        $region33: #{a_call__.1} parent=19 // pred_check
          %p439 = pneg %p167
        $region34: #{a_call__.1} parent=19 // pred_check_branch
          %441 = sbr.rel (%p439) target = $region36
        $region35: #{a_call__.1} parent=19 // pred_region
          %p442 = scmp.lt.s32.totalorder %s38, 1
          %s443 = scalar_select %p442, %s38, 1
          %s444 = scalar_lea.vmem %s4, %s443
        $region36: #{a_call__.1} parent=19 // pred_fallthru
          _
        // Predicated region
        $region37: #{a_call__.1} parent=19 // pred_check
          %p445 = pneg %p193
        $region38: #{a_call__.1} parent=19 // pred_check_branch
          %447 = sbr.rel (%p445) target = $region40
        $region39: #{a_call__.1} parent=19 // pred_region
          %s448 = sand.u32 %s31, 1
          %s449 = scalar_lea.sflag [#allocation9], %s448
          %s450 = sand.u32 %s183, 1
          %s451 = smul.addr %s450, 64
          %s452 = scalar_lea.vmem [#allocation8], %s451
          %s454 = ssub.s32 1024, 1024
          %455 = vsyncadd %s449, %s454
          %s456 = smul.addr %s38, 16
          %s457 = smul.addr %s456, 64
          %s458 = scalar_lea.hbm %s5, %s457
          %s459 = sshll.u32 %s452, 4
          %s460 = int_to_ptr.vmem [resolvable:$true] %s459
          %465 = dma.hbm_to_vmem [thread:$0]  %s458, 1024, %s460, %s449, 64, 64, 4
        $region40: #{a_call__.1} parent=19 // pred_fallthru
          _
        // Predicated region
        $region41: #{a_call__.1} parent=19 // pred_check
          %p466 = pneg %p219
        $region42: #{a_call__.1} parent=19 // pred_check_branch
          %468 = sbr.rel (%p466) target = $region44
        $region43: #{a_call__.1} parent=19 // pred_region
          %p469 = scmp.lt.s32.totalorder %s38, 1
          %s470 = scalar_select %p469, %s38, 1
          %s471 = scalar_lea.vmem %s6, %s470
        $region44: #{a_call__.1} parent=19 // pred_fallthru
          _
        // Predicated region
        $region45: #{a_call__.1} parent=19 // pred_check
          %p472 = pneg %p245
        $region46: #{a_call__.1} parent=19 // pred_check_branch
          %474 = sbr.rel (%p472) target = $region48
        $region47: #{a_call__.1} parent=19 // pred_region
          %s475 = sand.u32 %s31, 1
          %s476 = scalar_lea.sflag [#allocation9], %s475
          %s477 = sand.u32 %s235, 1
          %s478 = smul.addr %s477, 64
          %s479 = scalar_lea.vmem [#allocation10], %s478
          %s481 = ssub.s32 1024, 1024
          %482 = vsyncadd %s476, %s481
          %s483 = smul.addr %s38, 16
          %s484 = smul.addr %s483, 64
          %s485 = scalar_lea.hbm %s7, %s484
          %s486 = sshll.u32 %s479, 4
          %s487 = int_to_ptr.vmem [resolvable:$true] %s486
          %492 = dma.hbm_to_vmem [thread:$0]  %s485, 1024, %s487, %s476, 64, 64, 4
        $region48: #{a_call__.1} parent=19 // pred_fallthru
          _
        // Predicated region
        $region49: #{a_call__.1} parent=19 // pred_check
          %p493 = pneg %p271
        $region50: #{a_call__.1} parent=19 // pred_check_branch
          %495 = sbr.rel (%p493) target = $region52
        $region51: #{a_call__.1} parent=19 // pred_region
          %p496 = scmp.lt.s32.totalorder %s38, 1
          %s497 = scalar_select %p496, %s38, 1
          %s498 = scalar_lea.vmem %s8, %s497
        $region52: #{a_call__.1} parent=19 // pred_fallthru
          _
        // Predicated region
        $region53: #{a_call__.1} parent=19 // pred_check
          %p499 = pneg %p297
        $region54: #{a_call__.1} parent=19 // pred_check_branch
          %501 = sbr.rel (%p499) target = $region56
        $region55: #{a_call__.1} parent=19 // pred_region
          %p502 = scmp.lt.s32.totalorder %s38, 1
          %s503 = scalar_select %p502, %s38, 1
          %s504 = scalar_lea.vmem %s9, %s503
        $region56: #{a_call__.1} parent=19 // pred_fallthru
          _
      $region20: #{a_call__.1} parent=5 // pred_fallthru
        _
      %p505 = scmp.le.s32.totalorder 1, %s31
      %p506 = scmp.lt.s32.totalorder %s31, 3
      %p507 = pnand %p505, %p506
      %p508 = pneg %p507
      // Predicated region
      $region57: #{a_call__.1} parent=5 // pred_check
        _
      $region58: #{a_call__.1} parent=5 // pred_check_branch
        %510 = sbr.rel (%p507) target = $region60
      $region59: #{a_call__.1} parent=5 // pred_region
        %s511 = ssub.s32 %s31, 1
        // Predicated region
        $region61: #{a_call__.1} parent=59 // pred_check
          %p512 = pneg %p69
        $region62: #{a_call__.1} parent=59 // pred_check_branch
          %514 = sbr.rel (%p512) target = $region64
        $region63: #{a_call__.1} parent=59 // pred_region
          %515 = dma.done [#allocation3], 64
        $region64: #{a_call__.1} parent=59 // pred_fallthru
          _
        %s516 = sand.u32 %s36, 1
        %s517 = scalar_lea.sflag [#allocation6], %s516
        %s518 = sand.u32 %s82, 1
        %s519 = smul.addr %s518, 32
        %s520 = scalar_lea.vmem [#allocation5], %s519
        // Predicated region
        $region65: #{a_call__.1} parent=59 // pred_check
          %p521 = pneg %p95
        $region66: #{a_call__.1} parent=59 // pred_check_branch
          %523 = sbr.rel (%p521) target = $region68
        $region67: #{a_call__.1} parent=59 // pred_region
          %524 = dma.done %s517, 512
        $region68: #{a_call__.1} parent=59 // pred_fallthru
          _
        %s525 = sand.u32 %s36, 1
        %s526 = scalar_lea.sflag [#allocation6], %s525
        %s527 = sand.u32 %s134, 1
        %s528 = smul.addr %s527, 64
        %s529 = scalar_lea.vmem [#allocation7], %s528
        // Predicated region
        $region69: #{a_call__.1} parent=59 // pred_check
          %p530 = pneg %p147
        $region70: #{a_call__.1} parent=59 // pred_check_branch
          %532 = sbr.rel (%p530) target = $region72
        $region71: #{a_call__.1} parent=59 // pred_region
          %533 = dma.done %s526, 1024
        $region72: #{a_call__.1} parent=59 // pred_fallthru
          _
        %s534 = sand.u32 %s36, 1
        %s535 = scalar_lea.sflag [#allocation9], %s534
        %s536 = sand.u32 %s186, 1
        %s537 = smul.addr %s536, 64
        %s538 = scalar_lea.vmem [#allocation8], %s537
        // Predicated region
        $region73: #{a_call__.1} parent=59 // pred_check
          %p539 = pneg %p199
        $region74: #{a_call__.1} parent=59 // pred_check_branch
          %541 = sbr.rel (%p539) target = $region76
        $region75: #{a_call__.1} parent=59 // pred_region
          %542 = dma.done %s535, 1024
        $region76: #{a_call__.1} parent=59 // pred_fallthru
          _
        %s543 = sand.u32 %s36, 1
        %s544 = scalar_lea.sflag [#allocation9], %s543
        %s545 = sand.u32 %s238, 1
        %s546 = smul.addr %s545, 64
        %s547 = scalar_lea.vmem [#allocation10], %s546
        // Predicated region
        $region77: #{a_call__.1} parent=59 // pred_check
          %p548 = pneg %p251
        $region78: #{a_call__.1} parent=59 // pred_check_branch
          %550 = sbr.rel (%p548) target = $region80
        $region79: #{a_call__.1} parent=59 // pred_region
          %551 = dma.done %s544, 1024
        $region80: #{a_call__.1} parent=59 // pred_fallthru
          _
        %p552 = pneg %p69
        %p553 = pneg %p66
        %s554 = sand.u32 %s36, 1
        %s555 = scalar_lea.sflag [#allocation6], %s554
        %s556 = sand.u32 %s82, 1
        %s557 = smul.addr %s556, 32
        %s558 = scalar_lea.vmem [#allocation5], %s557
        %p559 = pneg %p95
        %p560 = pneg %p92
        %p561 = scmp.lt.s32.totalorder %s40, 1
        %s562 = scalar_select %p561, %s40, 1
        %s563 = scalar_lea.vmem %s2, %s562
        %p564 = pneg %p121
        %p565 = pneg %p118
        %s566 = sand.u32 %s36, 1
        %s567 = scalar_lea.sflag [#allocation6], %s566
        %s568 = sand.u32 %s134, 1
        %s569 = smul.addr %s568, 64
        %s570 = scalar_lea.vmem [#allocation7], %s569
        %p571 = pneg %p147
        %p572 = pneg %p144
        %p573 = scmp.lt.s32.totalorder %s40, 1
        %s574 = scalar_select %p573, %s40, 1
        %s575 = scalar_lea.vmem %s4, %s574
        %p576 = pneg %p173
        %p577 = pneg %p170
        %s578 = sand.u32 %s36, 1
        %s579 = scalar_lea.sflag [#allocation9], %s578
        %s580 = sand.u32 %s186, 1
        %s581 = smul.addr %s580, 64
        %s582 = scalar_lea.vmem [#allocation8], %s581
        %p583 = pneg %p199
        %p584 = pneg %p196
        %p585 = scmp.lt.s32.totalorder %s40, 1
        %s586 = scalar_select %p585, %s40, 1
        %s587 = scalar_lea.vmem %s6, %s586
        %p588 = pneg %p225
        %p589 = pneg %p222
        %s590 = sand.u32 %s36, 1
        %s591 = scalar_lea.sflag [#allocation9], %s590
        %s592 = sand.u32 %s238, 1
        %s593 = smul.addr %s592, 64
        %s594 = scalar_lea.vmem [#allocation10], %s593
        %p595 = pneg %p251
        %p596 = pneg %p248
        %p597 = scmp.lt.s32.totalorder %s40, 1
        %s598 = scalar_select %p597, %s40, 1
        %s599 = scalar_lea.vmem %s8, %s598
        %p600 = pneg %p277
        %p601 = pneg %p274
        %p602 = scmp.lt.s32.totalorder %s40, 1
        %s603 = scalar_select %p602, %s40, 1
        %s604 = scalar_lea.vmem %s9, %s603
        %p605 = pneg %p303
        %p606 = pneg %p300
        %p607 = pneg %p331
        %p608 = pneg %p328
        %s609 = sand.u32 %s318, 1
        %s610 = scalar_lea.sflag [#allocation4], %s609
        %s611 = sand.u32 %s318, 1
        %s612 = smul.addr %s611, 4
        %s613 = scalar_lea.vmem [#allocation11], %s612
        %p614 = pneg %p359
        %p615 = pneg %p356
        %s616 = sand.u32 %s346, 1
        %s617 = scalar_lea.sflag [#allocation13], %s616
        %s618 = sand.u32 %s346, 1
        %s619 = smul.addr %s618, 4
        %s620 = scalar_lea.vmem [#allocation12], %s619
        %p621 = scmp.lt.s32.totalorder %s40, 1
        %s622 = scalar_select %p621, %s40, 1
        %s623 = scalar_lea.vmem %s2, %s622
        %p624 = scmp.lt.s32.totalorder %s40, 1
        %s625 = scalar_select %p624, %s40, 1
        %s626 = scalar_lea.vmem %s4, %s625
        %p627 = scmp.lt.s32.totalorder %s40, 1
        %s628 = scalar_select %p627, %s40, 1
        %s629 = scalar_lea.vmem %s6, %s628
        %p630 = scmp.lt.s32.totalorder %s40, 1
        %s631 = scalar_select %p630, %s40, 1
        %s632 = scalar_lea.vmem %s8, %s631
        %p633 = scmp.lt.s32.totalorder %s40, 1
        %s634 = scalar_select %p633, %s40, 1
        %s635 = scalar_lea.vmem %s9, %s634
        %v637 = vld [vmem:[#allocation2] sm:$0xf]
        %v638 = vpack.c.bf16 %v637, %v637
        %v639 = vld [vmem:[%s520] sm:$0xf]
        %v640 = vld [vmem:[%s520 + $0x4] sm:$0xf]
        %v641 = vld [vmem:[%s520 + $0x8] sm:$0xf]
        %v642 = vld [vmem:[%s520 + $0xc] sm:$0xf]
        %v643 = vld [vmem:[%s520 + $0x10] sm:$0xf]
        %v644 = vld [vmem:[%s520 + $0x14] sm:$0xf]
        %v645 = vld [vmem:[%s520 + $0x18] sm:$0xf]
        %v646 = vld [vmem:[%s520 + $0x1c] sm:$0xf]
        %v647 = vld [vmem:[%s623] sm:$0x1]
        %v649 = vlaneseq
        %v650 = vshrl.u32 %v649, 7
        %v651 = vsub.s32 0, %v650
        %v652 = vrot.slane %v647, %v651
        %v662 = vunpack.c.l.b16 %v639
        %v663 = vunpack.c.l.b16 %v640
        %v664 = vunpack.c.l.b16 %v641
        %v665 = vunpack.c.l.b16 %v642
        %v666 = vunpack.c.l.b16 %v643
        %v667 = vunpack.c.l.b16 %v644
        %v668 = vunpack.c.l.b16 %v645
        %v669 = vunpack.c.l.b16 %v646
        %v670 = vpack.c.b16 %v663, %v662
        %v671 = vpack.c.b16 %v665, %v664
        %v672 = vpack.c.b16 %v667, %v666
        %v673 = vpack.c.b16 %v669, %v668
        %vm678 = vcmask 523264
        %v680 = vsel %vm678, %v638, 0
        %682 = vmatprep.subr.bf16.mxu0 0
        %683 = vmatpush1.bf16.msra.mxu0 0
        %684 = vmatprep.subr.bf16.mxu0 0
        %685 = vmatpush1.bf16.msra.mxu0 0
        %686 = vmatprep.subr.bf16.mxu0 0
        %687 = vmatpush1.bf16.msra.mxu0 0
        %688 = vmatprep.subr.bf16.mxu0 0
        %689 = vmatpush1.bf16.msra.mxu0 0
        %690 = vmatprep.subr.bf16.mxu0 0
        %691 = vmatpush1.bf16.msra.mxu0 %v673
        %692 = vmatprep.subr.bf16.mxu0 0
        %693 = vmatpush1.bf16.msra.mxu0 %v672
        %694 = vmatprep.subr.bf16.mxu0 0
        %695 = vmatpush1.bf16.msra.mxu0 %v671
        %696 = vmatprep.subr.bf16.mxu0 0
        %697 = vmatpush1.bf16.msra.mxu0 %v670
        %698 = vmatprep.subr.bf16.mxu0 0
        %699 = vmatpush2.bf16.msra.mxu0 0
        %700 = vmatprep.subr.bf16.mxu0 0
        %701 = vmatpush2.bf16.msra.mxu0 0
        %702 = vmatprep.subr.bf16.mxu0 0
        %703 = vmatpush2.bf16.msra.mxu0 0
        %704 = vmatprep.subr.bf16.mxu0 0
        %705 = vmatpush2.bf16.msra.mxu0 0
        %706 = vmatprep.subr.bf16.mxu0 0
        %707 = vmatpush2.bf16.msra.mxu0 0
        %708 = vmatprep.subr.bf16.mxu0 0
        %709 = vmatpush2.bf16.msra.mxu0 0
        %710 = vmatprep.subr.bf16.mxu0 0
        %711 = vmatpush2.bf16.msra.mxu0 0
        %712 = vmatprep.subr.bf16.mxu0 0
        %713 = vmatpush2.bf16.msra.mxu0 0
        %714 = vmatprep.mubr.bf16.mxu0 0
        %715 = vmatmul.mubr.bf16.gmra.mxu0 %v680
        %v716 = vpop.f32.mrf.mxu0
        %v717 = vadd.f32 %v652, %v716
        %v718 = vpop.f32.mrf.mxu0
        %v719 = vpop.f32.mrf.mxu0
        %v720 = vpop.f32.mrf.mxu0
        %721 = vdwg.mxu0
        %vm722 = vcmp.gt.f32.partialorder %v717, 0.0
        %v723 = vmul.f32 %v717, 0.01
        %v724 = vsel %vm722, %v717, %v723
        %v725 = vpack.c.bf16 %v724, %v724
        %v726 = vld [vmem:[%s529] sm:$0xf]
        %v727 = vld [vmem:[%s529 + $0x4] sm:$0xf]
        %v728 = vld [vmem:[%s529 + $0x8] sm:$0xf]
        %v729 = vld [vmem:[%s529 + $0xc] sm:$0xf]
        %v730 = vld [vmem:[%s529 + $0x10] sm:$0xf]
        %v731 = vld [vmem:[%s529 + $0x14] sm:$0xf]
        %v732 = vld [vmem:[%s529 + $0x18] sm:$0xf]
        %v733 = vld [vmem:[%s529 + $0x1c] sm:$0xf]
        %v734 = vld [vmem:[%s529 + $0x20] sm:$0xf]
        %v735 = vld [vmem:[%s529 + $0x24] sm:$0xf]
        %v736 = vld [vmem:[%s529 + $0x28] sm:$0xf]
        %v737 = vld [vmem:[%s529 + $0x2c] sm:$0xf]
        %v738 = vld [vmem:[%s529 + $0x30] sm:$0xf]
        %v739 = vld [vmem:[%s529 + $0x34] sm:$0xf]
        %v740 = vld [vmem:[%s529 + $0x38] sm:$0xf]
        %v741 = vld [vmem:[%s529 + $0x3c] sm:$0xf]
        %v742 = vld [vmem:[%s626] sm:$0x1]
        %v744 = vlaneseq
        %v745 = vshrl.u32 %v744, 7
        %v746 = vsub.s32 0, %v745
        %v747 = vrot.slane %v742, %v746
        %v765 = vunpack.c.l.b16 %v726
        %v766 = vunpack.c.l.b16 %v727
        %v767 = vunpack.c.l.b16 %v728
        %v768 = vunpack.c.l.b16 %v729
        %v769 = vunpack.c.l.b16 %v730
        %v770 = vunpack.c.l.b16 %v731
        %v771 = vunpack.c.l.b16 %v732
        %v772 = vunpack.c.l.b16 %v733
        %v773 = vunpack.c.l.b16 %v734
        %v774 = vunpack.c.l.b16 %v735
        %v775 = vunpack.c.l.b16 %v736
        %v776 = vunpack.c.l.b16 %v737
        %v777 = vunpack.c.l.b16 %v738
        %v778 = vunpack.c.l.b16 %v739
        %v779 = vunpack.c.l.b16 %v740
        %v780 = vunpack.c.l.b16 %v741
        %v781 = vpack.c.b16 %v766, %v765
        %v782 = vpack.c.b16 %v768, %v767
        %v783 = vpack.c.b16 %v770, %v769
        %v784 = vpack.c.b16 %v772, %v771
        %v785 = vpack.c.b16 %v774, %v773
        %v786 = vpack.c.b16 %v776, %v775
        %v787 = vpack.c.b16 %v778, %v777
        %v788 = vpack.c.b16 %v780, %v779
        %797 = vmatprep.subr.bf16.mxu0 0
        %798 = vmatpush1.bf16.msra.mxu0 %v788
        %799 = vmatprep.subr.bf16.mxu0 0
        %800 = vmatpush1.bf16.msra.mxu0 %v787
        %801 = vmatprep.subr.bf16.mxu0 0
        %802 = vmatpush1.bf16.msra.mxu0 %v786
        %803 = vmatprep.subr.bf16.mxu0 0
        %804 = vmatpush1.bf16.msra.mxu0 %v785
        %805 = vmatprep.subr.bf16.mxu0 0
        %806 = vmatpush1.bf16.msra.mxu0 %v784
        %807 = vmatprep.subr.bf16.mxu0 0
        %808 = vmatpush1.bf16.msra.mxu0 %v783
        %809 = vmatprep.subr.bf16.mxu0 0
        %810 = vmatpush1.bf16.msra.mxu0 %v782
        %811 = vmatprep.subr.bf16.mxu0 0
        %812 = vmatpush1.bf16.msra.mxu0 %v781
        %813 = vmatprep.subr.bf16.mxu0 0
        %814 = vmatpush2.bf16.msra.mxu0 0
        %815 = vmatprep.subr.bf16.mxu0 0
        %816 = vmatpush2.bf16.msra.mxu0 0
        %817 = vmatprep.subr.bf16.mxu0 0
        %818 = vmatpush2.bf16.msra.mxu0 0
        %819 = vmatprep.subr.bf16.mxu0 0
        %820 = vmatpush2.bf16.msra.mxu0 0
        %821 = vmatprep.subr.bf16.mxu0 0
        %822 = vmatpush2.bf16.msra.mxu0 0
        %823 = vmatprep.subr.bf16.mxu0 0
        %824 = vmatpush2.bf16.msra.mxu0 0
        %825 = vmatprep.subr.bf16.mxu0 0
        %826 = vmatpush2.bf16.msra.mxu0 0
        %827 = vmatprep.subr.bf16.mxu0 0
        %828 = vmatpush2.bf16.msra.mxu0 0
        %829 = vmatprep.mubr.bf16.mxu0 0
        %830 = vmatmul.mubr.bf16.gmra.mxu0 %v725
        %v831 = vpop.f32.mrf.mxu0
        %v832 = vadd.f32 %v747, %v831
        %v833 = vpop.f32.mrf.mxu0
        %v834 = vpop.f32.mrf.mxu0
        %v835 = vpop.f32.mrf.mxu0
        %836 = vdwg.mxu0
        %vm837 = vcmp.gt.f32.partialorder %v832, 0.0
        %v838 = vmul.f32 %v832, 0.01
        %v839 = vsel %vm837, %v832, %v838
        %v840 = vpack.c.bf16 %v839, %v839
        %v841 = vld [vmem:[%s538] sm:$0xf]
        %v842 = vld [vmem:[%s538 + $0x4] sm:$0xf]
        %v843 = vld [vmem:[%s538 + $0x8] sm:$0xf]
        %v844 = vld [vmem:[%s538 + $0xc] sm:$0xf]
        %v845 = vld [vmem:[%s538 + $0x10] sm:$0xf]
        %v846 = vld [vmem:[%s538 + $0x14] sm:$0xf]
        %v847 = vld [vmem:[%s538 + $0x18] sm:$0xf]
        %v848 = vld [vmem:[%s538 + $0x1c] sm:$0xf]
        %v849 = vld [vmem:[%s538 + $0x20] sm:$0xf]
        %v850 = vld [vmem:[%s538 + $0x24] sm:$0xf]
        %v851 = vld [vmem:[%s538 + $0x28] sm:$0xf]
        %v852 = vld [vmem:[%s538 + $0x2c] sm:$0xf]
        %v853 = vld [vmem:[%s538 + $0x30] sm:$0xf]
        %v854 = vld [vmem:[%s538 + $0x34] sm:$0xf]
        %v855 = vld [vmem:[%s538 + $0x38] sm:$0xf]
        %v856 = vld [vmem:[%s538 + $0x3c] sm:$0xf]
        %v857 = vld [vmem:[%s629] sm:$0x1]
        %v859 = vlaneseq
        %v860 = vshrl.u32 %v859, 7
        %v861 = vsub.s32 0, %v860
        %v862 = vrot.slane %v857, %v861
        %v880 = vunpack.c.l.b16 %v841
        %v881 = vunpack.c.l.b16 %v842
        %v882 = vunpack.c.l.b16 %v843
        %v883 = vunpack.c.l.b16 %v844
        %v884 = vunpack.c.l.b16 %v845
        %v885 = vunpack.c.l.b16 %v846
        %v886 = vunpack.c.l.b16 %v847
        %v887 = vunpack.c.l.b16 %v848
        %v888 = vunpack.c.l.b16 %v849
        %v889 = vunpack.c.l.b16 %v850
        %v890 = vunpack.c.l.b16 %v851
        %v891 = vunpack.c.l.b16 %v852
        %v892 = vunpack.c.l.b16 %v853
        %v893 = vunpack.c.l.b16 %v854
        %v894 = vunpack.c.l.b16 %v855
        %v895 = vunpack.c.l.b16 %v856
        %v896 = vpack.c.b16 %v881, %v880
        %v897 = vpack.c.b16 %v883, %v882
        %v898 = vpack.c.b16 %v885, %v884
        %v899 = vpack.c.b16 %v887, %v886
        %v900 = vpack.c.b16 %v889, %v888
        %v901 = vpack.c.b16 %v891, %v890
        %v902 = vpack.c.b16 %v893, %v892
        %v903 = vpack.c.b16 %v895, %v894
        %912 = vmatprep.subr.bf16.mxu0 0
        %913 = vmatpush1.bf16.msra.mxu0 %v903
        %914 = vmatprep.subr.bf16.mxu0 0
        %915 = vmatpush1.bf16.msra.mxu0 %v902
        %916 = vmatprep.subr.bf16.mxu0 0
        %917 = vmatpush1.bf16.msra.mxu0 %v901
        %918 = vmatprep.subr.bf16.mxu0 0
        %919 = vmatpush1.bf16.msra.mxu0 %v900
        %920 = vmatprep.subr.bf16.mxu0 0
        %921 = vmatpush1.bf16.msra.mxu0 %v899
        %922 = vmatprep.subr.bf16.mxu0 0
        %923 = vmatpush1.bf16.msra.mxu0 %v898
        %924 = vmatprep.subr.bf16.mxu0 0
        %925 = vmatpush1.bf16.msra.mxu0 %v897
        %926 = vmatprep.subr.bf16.mxu0 0
        %927 = vmatpush1.bf16.msra.mxu0 %v896
        %928 = vmatprep.subr.bf16.mxu0 0
        %929 = vmatpush2.bf16.msra.mxu0 0
        %930 = vmatprep.subr.bf16.mxu0 0
        %931 = vmatpush2.bf16.msra.mxu0 0
        %932 = vmatprep.subr.bf16.mxu0 0
        %933 = vmatpush2.bf16.msra.mxu0 0
        %934 = vmatprep.subr.bf16.mxu0 0
        %935 = vmatpush2.bf16.msra.mxu0 0
        %936 = vmatprep.subr.bf16.mxu0 0
        %937 = vmatpush2.bf16.msra.mxu0 0
        %938 = vmatprep.subr.bf16.mxu0 0
        %939 = vmatpush2.bf16.msra.mxu0 0
        %940 = vmatprep.subr.bf16.mxu0 0
        %941 = vmatpush2.bf16.msra.mxu0 0
        %942 = vmatprep.subr.bf16.mxu0 0
        %943 = vmatpush2.bf16.msra.mxu0 0
        %944 = vmatprep.mubr.bf16.mxu0 0
        %945 = vmatmul.mubr.bf16.gmra.mxu0 %v840
        %v946 = vpop.f32.mrf.mxu0
        %v947 = vadd.f32 %v862, %v946
        %v948 = vpop.f32.mrf.mxu0
        %v949 = vpop.f32.mrf.mxu0
        %v950 = vpop.f32.mrf.mxu0
        %951 = vdwg.mxu0
        %vm952 = vcmp.gt.f32.partialorder %v947, 0.0
        %v953 = vmul.f32 %v947, 0.01
        %v954 = vsel %vm952, %v947, %v953
        %v955 = vpack.c.bf16 %v954, %v954
        %v956 = vld [vmem:[%s547] sm:$0xf]
        %v957 = vld [vmem:[%s547 + $0x4] sm:$0xf]
        %v958 = vld [vmem:[%s547 + $0x8] sm:$0xf]
        %v959 = vld [vmem:[%s547 + $0xc] sm:$0xf]
        %v960 = vld [vmem:[%s547 + $0x10] sm:$0xf]
        %v961 = vld [vmem:[%s547 + $0x14] sm:$0xf]
        %v962 = vld [vmem:[%s547 + $0x18] sm:$0xf]
        %v963 = vld [vmem:[%s547 + $0x1c] sm:$0xf]
        %v964 = vld [vmem:[%s547 + $0x20] sm:$0xf]
        %v965 = vld [vmem:[%s547 + $0x24] sm:$0xf]
        %v966 = vld [vmem:[%s547 + $0x28] sm:$0xf]
        %v967 = vld [vmem:[%s547 + $0x2c] sm:$0xf]
        %v968 = vld [vmem:[%s547 + $0x30] sm:$0xf]
        %v969 = vld [vmem:[%s547 + $0x34] sm:$0xf]
        %v970 = vld [vmem:[%s547 + $0x38] sm:$0xf]
        %v971 = vld [vmem:[%s547 + $0x3c] sm:$0xf]
        %v972 = vld [vmem:[%s632] sm:$0x1]
        %v974 = vlaneseq
        %v975 = vshrl.u32 %v974, 7
        %v976 = vsub.s32 0, %v975
        %v977 = vrot.slane %v972, %v976
        %v995 = vunpack.c.l.b16 %v956
        %v996 = vunpack.c.l.b16 %v957
        %v997 = vunpack.c.l.b16 %v958
        %v998 = vunpack.c.l.b16 %v959
        %v999 = vunpack.c.l.b16 %v960
        %v1000 = vunpack.c.l.b16 %v961
        %v1001 = vunpack.c.l.b16 %v962
        %v1002 = vunpack.c.l.b16 %v963
        %v1003 = vunpack.c.l.b16 %v964
        %v1004 = vunpack.c.l.b16 %v965
        %v1005 = vunpack.c.l.b16 %v966
        %v1006 = vunpack.c.l.b16 %v967
        %v1007 = vunpack.c.l.b16 %v968
        %v1008 = vunpack.c.l.b16 %v969
        %v1009 = vunpack.c.l.b16 %v970
        %v1010 = vunpack.c.l.b16 %v971
        %v1011 = vpack.c.b16 %v996, %v995
        %v1012 = vpack.c.b16 %v998, %v997
        %v1013 = vpack.c.b16 %v1000, %v999
        %v1014 = vpack.c.b16 %v1002, %v1001
        %v1015 = vpack.c.b16 %v1004, %v1003
        %v1016 = vpack.c.b16 %v1006, %v1005
        %v1017 = vpack.c.b16 %v1008, %v1007
        %v1018 = vpack.c.b16 %v1010, %v1009
        %1027 = vmatprep.subr.bf16.mxu0 0
        %1028 = vmatpush1.bf16.msra.mxu0 %v1018
        %1029 = vmatprep.subr.bf16.mxu0 0
        %1030 = vmatpush1.bf16.msra.mxu0 %v1017
        %1031 = vmatprep.subr.bf16.mxu0 0
        %1032 = vmatpush1.bf16.msra.mxu0 %v1016
        %1033 = vmatprep.subr.bf16.mxu0 0
        %1034 = vmatpush1.bf16.msra.mxu0 %v1015
        %1035 = vmatprep.subr.bf16.mxu0 0
        %1036 = vmatpush1.bf16.msra.mxu0 %v1014
        %1037 = vmatprep.subr.bf16.mxu0 0
        %1038 = vmatpush1.bf16.msra.mxu0 %v1013
        %1039 = vmatprep.subr.bf16.mxu0 0
        %1040 = vmatpush1.bf16.msra.mxu0 %v1012
        %1041 = vmatprep.subr.bf16.mxu0 0
        %1042 = vmatpush1.bf16.msra.mxu0 %v1011
        %1043 = vmatprep.subr.bf16.mxu0 0
        %1044 = vmatpush2.bf16.msra.mxu0 0
        %1045 = vmatprep.subr.bf16.mxu0 0
        %1046 = vmatpush2.bf16.msra.mxu0 0
        %1047 = vmatprep.subr.bf16.mxu0 0
        %1048 = vmatpush2.bf16.msra.mxu0 0
        %1049 = vmatprep.subr.bf16.mxu0 0
        %1050 = vmatpush2.bf16.msra.mxu0 0
        %1051 = vmatprep.subr.bf16.mxu0 0
        %1052 = vmatpush2.bf16.msra.mxu0 0
        %1053 = vmatprep.subr.bf16.mxu0 0
        %1054 = vmatpush2.bf16.msra.mxu0 0
        %1055 = vmatprep.subr.bf16.mxu0 0
        %1056 = vmatpush2.bf16.msra.mxu0 0
        %1057 = vmatprep.subr.bf16.mxu0 0
        %1058 = vmatpush2.bf16.msra.mxu0 0
        %1059 = vmatprep.mubr.bf16.mxu0 0
        %1060 = vmatmul.mubr.bf16.gmra.mxu0 %v955
        %v1061 = vpop.f32.mrf.mxu0
        %v1062 = vadd.f32 %v977, %v1061
        %v1063 = vpop.f32.mrf.mxu0
        %v1064 = vpop.f32.mrf.mxu0
        %v1065 = vpop.f32.mrf.mxu0
        %1066 = vdwg.mxu0
        %vm1067 = vcmask 60416
        %1068 = vst.msk [vmem:[%s613] sm:$0xf] %vm1067, %v1062
        %v1069 = vld [vmem:[%s635] sm:$0x1]
        %v1070 = vmul.f32 %v1069, 1.442695
        %v1071 = vpow.pop %v1070
        %v1073 = vlaneseq
        %v1074 = vshrl.u32 %v1073, 7
        %v1075 = vsub.s32 0, %v1074
        %v1076 = vrot.slane %v1071, %v1075
        %1078 = vst.msk [vmem:[%s620] sm:$0xf] %vm1067, %v1076
        %s1079 = sand.u32 %s318, 1
        %s1080 = scalar_lea.sflag [#allocation4], %s1079
        %s1081 = sand.u32 %s318, 1
        %s1082 = smul.addr %s1081, 4
        %s1083 = scalar_lea.vmem [#allocation11], %s1082
        %s1084 = sand.u32 %s346, 1
        %s1085 = scalar_lea.sflag [#allocation13], %s1084
        %s1086 = sand.u32 %s346, 1
        %s1087 = smul.addr %s1086, 4
        %s1088 = scalar_lea.vmem [#allocation12], %s1087
        // Predicated region
        $region81: #{a_call__.1} parent=59 // pred_check
          %p1089 = pneg %p328
        $region82: #{a_call__.1} parent=59 // pred_check_branch
          %1091 = sbr.rel (%p1089) target = $region84
        $region83: #{a_call__.1} parent=59 // pred_region
          %s1093 = ssub.s32 64, 64
          %1094 = vsyncadd %s1080, %s1093
          %s1095 = sadd.s32 %s41, %s40
          %s1096 = smul.addr %s1095, 64
          %s1097 = scalar_lea.hbm %s10, %s1096
          %s1099 = sshll.u32 %s1083, 4
          %s1100 = int_to_ptr.vmem [resolvable:$true] %s1099
          %1102 = dma.vmem_to_hbm [thread:$0]  %s1100, 64, %s1097, %s1080
        $region84: #{a_call__.1} parent=59 // pred_fallthru
          _
        // Predicated region
        $region85: #{a_call__.1} parent=59 // pred_check
          %p1103 = pneg %p356
        $region86: #{a_call__.1} parent=59 // pred_check_branch
          %1105 = sbr.rel (%p1103) target = $region88
        $region87: #{a_call__.1} parent=59 // pred_region
          %s1107 = ssub.s32 64, 64
          %1108 = vsyncadd %s1085, %s1107
          %s1109 = sadd.s32 %s41, %s40
          %s1110 = smul.addr %s1109, 64
          %s1111 = scalar_lea.hbm %s11, %s1110
          %s1113 = sshll.u32 %s1088, 4
          %s1114 = int_to_ptr.vmem [resolvable:$true] %s1113
          %1116 = dma.vmem_to_hbm [thread:$0]  %s1114, 64, %s1111, %s1085
        $region88: #{a_call__.1} parent=59 // pred_fallthru
          _
      $region60: #{a_call__.1} parent=5 // pred_fallthru
        _
      %p1117 = scmp.le.s32.totalorder 2, %s31
      // Predicated region
      $region89: #{a_call__.1} parent=5 // pred_check
        %p1118 = pneg %p1117
      $region90: #{a_call__.1} parent=5 // pred_check_branch
        %1120 = sbr.rel (%p1118) target = $region92
      $region91: #{a_call__.1} parent=5 // pred_region
        %s1121 = ssub.s32 %s31, 2
        // Predicated region
        $region93: #{a_call__.1} parent=91 // pred_check
          %p1122 = pneg %p334
        $region94: #{a_call__.1} parent=91 // pred_check_branch
          %1124 = sbr.rel (%p1122) target = $region96
        $region95: #{a_call__.1} parent=91 // pred_region
          %s1125 = sand.u32 %s319, 1
          %s1126 = scalar_lea.sflag [#allocation4], %s1125
          %s1127 = sand.u32 %s319, 1
          %s1128 = smul.addr %s1127, 4
          %s1129 = scalar_lea.vmem [#allocation11], %s1128
          %1130 = dma.done %s1126, 64
        $region96: #{a_call__.1} parent=91 // pred_fallthru
          _
        // Predicated region
        $region97: #{a_call__.1} parent=91 // pred_check
          %p1131 = pneg %p362
        $region98: #{a_call__.1} parent=91 // pred_check_branch
          %1133 = sbr.rel (%p1131) target = $region100
        $region99: #{a_call__.1} parent=91 // pred_region
          %s1134 = sand.u32 %s347, 1
          %s1135 = scalar_lea.sflag [#allocation13], %s1134
          %s1136 = sand.u32 %s347, 1
          %s1137 = smul.addr %s1136, 4
          %s1138 = scalar_lea.vmem [#allocation12], %s1137
          %1139 = dma.done %s1135, 64
        $region100: #{a_call__.1} parent=91 // pred_fallthru
          _
      $region92: #{a_call__.1} parent=5 // pred_fallthru
        _
    $region6: #{a_call__.1} parent=1 // loop_footer
      %s35 = sadd.s32 1, %s31
    $region7: #{a_call__.1} parent=1 // loop_footer_branch
      %30 = sbr.rel target = $region3
    $region8: #{a_call__.1} parent=1 // loop_exit
      _
    %1140 = vsyncpa [#allocation3], 1
    %s1141 = scalar_lea.sflag [#allocation3], 1
    %1142 = vsyncpa %s1141, 1
    %1143 = vsyncpa [#allocation6], 1
    %s1144 = scalar_lea.sflag [#allocation6], 1
    %1145 = vsyncpa %s1144, 1
    %1146 = vsyncpa [#allocation9], 1
    %s1147 = scalar_lea.sflag [#allocation9], 1
    %1148 = vsyncpa %s1147, 1
    %1149 = vsyncpa [#allocation4], 1
    %s1150 = scalar_lea.sflag [#allocation4], 1
    %1151 = vsyncpa %s1150, 1
    %1152 = vsyncpa [#allocation13], 1
    %s1153 = scalar_lea.sflag [#allocation13], 1
    %1154 = vsyncpa %s1153, 1

</llo_original>
